<compile_context>
chip_gen: v6e
topology: v6e:2x2x1
jax: 0.10.0
libtpu: 0.0.40
codegen_flags: <defaults>
</compile_context>

<pallas_src>
import functools

import jax
import jax.numpy as jnp
from jax.experimental import pallas as pl
from jax.experimental.pallas import tpu as pltpu

_LANE = 128
_SUB = 8
_TARGET_BLOCK_BYTES = 2 * 1024 * 1024   # ~2 MiB of input per grid step per operand
_VMEM_LIMIT_BYTES = 32 * 1024 * 1024    # 3 inputs x 2 buffers x 2 MiB = 12 MiB + slack


def _smooth_l1(pred, target):
    # torch.nn.SmoothL1Loss elementwise term (beta = 1.0):
    #   0.5 * d^2  if |d| < 1 else |d| - 0.5
    d = jnp.abs(pred - target)
    return jnp.where(d < 1.0, 0.5 * d * d, d - 0.5)


def _single_block_kernel(old_ref, new_ref, ret_ref, out_ref, *, eps, inv_n):
    old = old_ref[...].astype(jnp.float32)
    new = new_ref[...].astype(jnp.float32)
    ret = ret_ref[...].astype(jnp.float32)
    clipped = old + jnp.clip(new - old, -eps, eps)
    # Any zero padding (pred == target == 0) contributes 0 to both sums.
    s1 = jnp.sum(_smooth_l1(new, ret), axis=(0, 1), keepdims=True)
    s2 = jnp.sum(_smooth_l1(clipped, ret), axis=(0, 1), keepdims=True)
    out_ref[...] = jnp.maximum(s1, s2) * inv_n


def _tiled_kernel(old_ref, new_ref, ret_ref, out_ref, *, eps, block_rows, width,
                  num_blocks, blocks_per_core, ragged_rows, total_rows):
    c = pl.program_id(0)          # core half (parallel axis)
    i = pl.program_id(1)          # step within this half (arbitrary axis)
    b = c * blocks_per_core + i   # logical row-block index over the whole array

    # Per-core partial-sum block stays resident in VMEM across the i axis.
    @pl.when(i == 0)
    def _init():
        out_ref[...] = jnp.zeros_like(out_ref)

    old = old_ref[...].astype(jnp.float32)
    new = new_ref[...].astype(jnp.float32)
    ret = ret_ref[...].astype(jnp.float32)
    clipped = old + jnp.clip(new - old, -eps, eps)
    l1 = _smooth_l1(new, ret)
    l2 = _smooth_l1(clipped, ret)

    def _accumulate(m1, m2):
        # vreg-shaped partial sums: pure VALU adds, no per-step cross-lane reduce.
        p1 = m1.reshape(block_rows // _SUB, _SUB, width).sum(axis=0)
        p2 = m2.reshape(block_rows // _SUB, _SUB, width).sum(axis=0)
        out_ref[0, 0, :, :] += p1
        out_ref[0, 1, :, :] += p2

    n_full = num_blocks - 1 if ragged_rows else num_blocks

    @pl.when(b < n_full)
    def _full_blocks():       # interior tiles: no masking work at all
        _accumulate(l1, l2)

    if ragged_rows:
        @pl.when(b == num_blocks - 1)
        def _tail_block():
            # Last row block extends past the real data. The out-of-bounds rows
            # hold unspecified values; they are zeroed by the select BEFORE the
            # accumulate (select does not propagate the unselected NaN/Inf).
            # Row indices fit comfortably in int32.
            row = jax.lax.broadcasted_iota(jnp.int32, (block_rows, width), 0)
            valid = (b * block_rows + row) < total_rows
            _accumulate(jnp.where(valid, l1, 0.0), jnp.where(valid, l2, 0.0))
    # Slots with b >= num_blocks (only possible when num_blocks is odd) read a
    # clamped valid block but accumulate nothing.


def clip_critic_loss(old_values, new_values, returns, *, eps=0.4, block_rows=4096):
    assert old_values.shape == new_values.shape == returns.shape
    n_total = int(old_values.size)
    last_dim = int(old_values.shape[-1]) if old_values.ndim >= 1 else 1
    itemsize = max(x.dtype.itemsize for x in (old_values, new_values, returns))

    # --- choose a zero-copy 2-D view (rows, width) of the inputs ----------------
    if n_total % _LANE == 0:
        # Free row-major reshape to an optimally lane-packed (N/128, 128) view.
        def view(x):
            return x.reshape(-1, _LANE)
        width = _LANE
    elif _LANE <= last_dim <= 8192:
        # Ragged total size but a decent full-width last dim: tile the 2-D view
        # directly (full-extent last dim), no padding copy in HBM.
        def view(x):
            return x.reshape(-1, last_dim)
        width = last_dim
    else:
        # Fallback for tiny/awkward ragged last dims: pad the flat view to a lane
        # multiple (one extra HBM pass). Padded zeros contribute 0 to both sums.
        # TODO(synk): avoid via allow_input_fusion or a prefix + tail split.
        pad = (-n_total) % _LANE
        def view(x):
            return jnp.pad(x.reshape(-1), (0, pad)).reshape(-1, _LANE)
        width = _LANE

    old2, new2, ret2 = view(old_values), view(new_values), view(returns)
    rows = int(old2.shape[0])

    # --- pick the row block from a per-buffer byte budget ----------------------
    block_cap = max(_SUB, (int(block_rows) // _SUB) * _SUB)
    w_pad = pl.cdiv(width, _LANE) * _LANE           # lane-padded VMEM width
    budget_rows = max(_SUB, (_TARGET_BLOCK_BYTES // (w_pad * itemsize)) // _SUB * _SUB)
    block_rows_eff = int(min(block_cap, budget_rows))

    inv_n = float(1.0 / n_total)

    # --- single-block fast path -------------------------------------------------
    if rows <= block_rows_eff:
        kernel = functools.partial(_single_block_kernel, eps=float(eps), inv_n=inv_n)
        out = pl.pallas_call(
            kernel,
            out_shape=jax.ShapeDtypeStruct((1, 1), jnp.float32),
            grid_spec=pltpu.PrefetchScalarGridSpec(
                num_scalar_prefetch=0,
                grid=(1,),
                in_specs=[pl.BlockSpec((rows, width), lambda i: (0, 0))] * 3,
                out_specs=pl.BlockSpec((1, 1), lambda i: (0, 0)),
            ),
            compiler_params=pltpu.CompilerParams(
                dimension_semantics=("arbitrary",),
                vmem_limit_bytes=_VMEM_LIMIT_BYTES),
        )(old2, new2, ret2)
        return out[0, 0]

    # --- tiled path: 2-way core split (parallel) x row blocks (arbitrary) -------
    num_blocks = int(pl.cdiv(rows, block_rows_eff))
    ragged_rows = (rows % block_rows_eff) != 0
    blocks_per_core = int(pl.cdiv(num_blocks, 2))

    def in_map(c, i):
        # Clamp so the (at most one) empty slot re-reads a valid block; its
        # contribution is skipped inside the kernel.
        return (jnp.minimum(c * blocks_per_core + i, num_blocks - 1), 0)

    tile_spec = pl.BlockSpec((block_rows_eff, width), in_map)
    kernel = functools.partial(
        _tiled_kernel, eps=float(eps), block_rows=block_rows_eff, width=width,
        num_blocks=num_blocks, blocks_per_core=blocks_per_core,
        ragged_rows=bool(ragged_rows), total_rows=rows)

    out = pl.pallas_call(
        kernel,
        out_shape=jax.ShapeDtypeStruct((2, 2, _SUB, width), jnp.float32),
        grid_spec=pltpu.PrefetchScalarGridSpec(
            num_scalar_prefetch=0,
            grid=(2, blocks_per_core),
            in_specs=[tile_spec] * 3,
            out_specs=pl.BlockSpec((1, 2, _SUB, width), lambda c, i: (c, 0, 0, 0)),
        ),
        compiler_params=pltpu.CompilerParams(
            dimension_semantics=("parallel", "arbitrary"),
            vmem_limit_bytes=_VMEM_LIMIT_BYTES),
    )(old2, new2, ret2)

    # Tiny epilogue: fold per-core partial sums, scale by 1/N, take the max.
    sums = jnp.sum(out, axis=(0, 2, 3))   # (2,) = [sum SmoothL1(new), sum SmoothL1(clipped)]
    return jnp.maximum(sums[0], sums[1]) * jnp.float32(inv_n)


def _reference(old_values, new_values, returns, eps=0.4):
    old = old_values.astype(jnp.float32)
    new = new_values.astype(jnp.float32)
    ret = returns.astype(jnp.float32)
    clipped = old + jnp.clip(new - old, -eps, eps)
    s1 = jnp.mean(_smooth_l1(new, ret))
    s2 = jnp.mean(_smooth_l1(clipped, ret))
    return jnp.maximum(s1, s2)


def _check(old, new, ret, *, eps=0.4, **kw):
    got = jax.block_until_ready(clip_critic_loss(old, new, ret, eps=eps, **kw))
    want = _reference(old, new, ret, eps=eps)
    assert jnp.allclose(got, want, atol=1e-5, rtol=1e-4), (got, want)


if __name__ == "__main__":
    key = jax.random.PRNGKey(0)
    ks = jax.random.split(key, 15)

    def gen(k1, k2, k3, shape, dtype=jnp.float32):
        old = jax.random.normal(k1, shape, dtype=jnp.float32).astype(dtype)
        new = jax.random.normal(k2, shape, dtype=jnp.float32).astype(dtype)
        ret = (jax.random.normal(k3, shape, dtype=jnp.float32) * 2.0).astype(dtype)
        return old, new, ret

    # 1) Small aligned PPO-style values: single-block fast path, (rows, 128) view.
    _check(*gen(ks[0], ks[1], ks[2], (16, 128)))

    # 2) Ragged total size with a >=128 last dim: direct 2-D view, no pad copy.
    _check(*gen(ks[3], ks[4], ks[5], (96, 257)))

    # 3) Tiled 2-core path, even block count, no tail mask (block_rows forced small).
    _check(*gen(ks[6], ks[7], ks[8], (512, 128)), block_rows=64)

    # 4) Tiled 2-core path with a ragged last row block and one empty slot (odd nb).
    _check(*gen(ks[9], ks[10], ks[11], (545, 128)), block_rows=64)

    # 5) bf16 storage dtype (in-kernel cast) and tiny-ragged pad fallback.
    _check(*gen(ks[12], ks[13], ks[14], (16, 128), dtype=jnp.bfloat16))
    _check(*gen(ks[0], ks[3], ks[6], (37, 3)))

    print("KERNEL_OK")
</pallas_src>

<mosaic_0001>
module attributes {stable_mosaic.version = 11 : i64} {
  func.func @_single_block_kernel(%arg0: i32, %arg1: memref<16x128xf32, #tpu.memory_space<vmem>>, %arg2: memref<16x128xf32, #tpu.memory_space<vmem>>, %arg3: memref<16x128xf32, #tpu.memory_space<vmem>>, %arg4: memref<1x1xf32, #tpu.memory_space<vmem>>) attributes {dimension_semantics = [#tpu.dimension_semantics<arbitrary>], iteration_bounds = array<i64: 1>, scalar_prefetch = 0 : i64, scratch_operands = 0 : i64, tpu.core_type = #tpu.core_type<tc>, window_params = [{pipeline_mode = #tpu.pipeline_mode<synchronous>, transform_indices = @transform_0, window_bounds = array<i64: 16, 128>}, {pipeline_mode = #tpu.pipeline_mode<synchronous>, transform_indices = @transform_1, window_bounds = array<i64: 16, 128>}, {pipeline_mode = #tpu.pipeline_mode<synchronous>, transform_indices = @transform_2, window_bounds = array<i64: 16, 128>}, {pipeline_mode = #tpu.pipeline_mode<synchronous>, transform_indices = @transform_3, window_bounds = array<i64: 1, 1>}]} {
    %c0 = arith.constant 0 : index
    %c0_0 = arith.constant 0 : index
    %0 = vector.load %arg1[%c0, %c0_0] : memref<16x128xf32, #tpu.memory_space<vmem>>, vector<16x128xf32>
    %c0_1 = arith.constant 0 : index
    %c0_2 = arith.constant 0 : index
    %1 = vector.load %arg2[%c0_1, %c0_2] : memref<16x128xf32, #tpu.memory_space<vmem>>, vector<16x128xf32>
    %c0_3 = arith.constant 0 : index
    %c0_4 = arith.constant 0 : index
    %2 = vector.load %arg3[%c0_3, %c0_4] : memref<16x128xf32, #tpu.memory_space<vmem>>, vector<16x128xf32>
    %3 = arith.subf %1, %0 : vector<16x128xf32>
    %cst = arith.constant -4.000000e-01 : f32
    %cst_5 = arith.constant 4.000000e-01 : f32
    %4 = vector.broadcast %cst : f32 to vector<16x128xf32>
    %5 = arith.maximumf %4, %3 : vector<16x128xf32>
    %6 = vector.broadcast %cst_5 : f32 to vector<16x128xf32>
    %7 = arith.minimumf %6, %5 : vector<16x128xf32>
    %8 = arith.addf %0, %7 : vector<16x128xf32>
    %9 = arith.subf %1, %2 : vector<16x128xf32>
    %10 = math.absf %9 : vector<16x128xf32>
    %cst_6 = arith.constant 1.000000e+00 : f32
    %11 = vector.broadcast %cst_6 : f32 to vector<16x128xf32>
    %12 = arith.cmpf olt, %10, %11 : vector<16x128xf32>
    %cst_7 = arith.constant 5.000000e-01 : f32
    %13 = vector.broadcast %cst_7 : f32 to vector<16x128xf32>
    %14 = arith.mulf %13, %10 : vector<16x128xf32>
    %15 = arith.mulf %14, %10 : vector<16x128xf32>
    %cst_8 = arith.constant 5.000000e-01 : f32
    %16 = vector.broadcast %cst_8 : f32 to vector<16x128xf32>
    %17 = arith.subf %10, %16 : vector<16x128xf32>
    %18 = arith.select %12, %15, %17 : vector<16x128xi1>, vector<16x128xf32>
    %19 = vector.shape_cast %18 : vector<16x128xf32> to vector<1x16x128xf32>
    %cst_9 = arith.constant dense<0.000000e+00> : vector<1xf32>
    %20 = vector.multi_reduction <add>, %19, %cst_9 [1, 2] : vector<1x16x128xf32> to vector<1xf32>
    %21 = vector.shape_cast %20 : vector<1xf32> to vector<1x1x1xf32>
    %22 = vector.extract %21[0, 0, 0] : f32 from vector<1x1x1xf32>
    %23 = vector.broadcast %22 : f32 to vector<1x1xf32>
    %24 = arith.subf %8, %2 : vector<16x128xf32>
    %25 = math.absf %24 : vector<16x128xf32>
    %cst_10 = arith.constant 1.000000e+00 : f32
    %26 = vector.broadcast %cst_10 : f32 to vector<16x128xf32>
    %27 = arith.cmpf olt, %25, %26 : vector<16x128xf32>
    %cst_11 = arith.constant 5.000000e-01 : f32
    %28 = vector.broadcast %cst_11 : f32 to vector<16x128xf32>
    %29 = arith.mulf %28, %25 : vector<16x128xf32>
    %30 = arith.mulf %29, %25 : vector<16x128xf32>
    %cst_12 = arith.constant 5.000000e-01 : f32
    %31 = vector.broadcast %cst_12 : f32 to vector<16x128xf32>
    %32 = arith.subf %25, %31 : vector<16x128xf32>
    %33 = arith.select %27, %30, %32 : vector<16x128xi1>, vector<16x128xf32>
    %34 = vector.shape_cast %33 : vector<16x128xf32> to vector<1x16x128xf32>
    %cst_13 = arith.constant dense<0.000000e+00> : vector<1xf32>
    %35 = vector.multi_reduction <add>, %34, %cst_13 [1, 2] : vector<1x16x128xf32> to vector<1xf32>
    %36 = vector.shape_cast %35 : vector<1xf32> to vector<1x1x1xf32>
    %37 = vector.extract %36[0, 0, 0] : f32 from vector<1x1x1xf32>
    %38 = vector.broadcast %37 : f32 to vector<1x1xf32>
    %39 = arith.maximumf %23, %38 : vector<1x1xf32>
    %cst_14 = arith.constant 4.8828125E-4 : f32
    %40 = vector.broadcast %cst_14 : f32 to vector<1x1xf32>
    %41 = arith.mulf %39, %40 : vector<1x1xf32>
    %c0_15 = arith.constant 0 : index
    %c0_16 = arith.constant 0 : index
    %42 = vector.load %arg4[%c0_15, %c0_16] : memref<1x1xf32, #tpu.memory_space<vmem>>, vector<1x1xf32>
    tpu.vector_store %arg4[%c0_15, %c0_16], %41 {strides = array<i32>} : memref<1x1xf32, #tpu.memory_space<vmem>>, vector<1x1xf32>,
    return
  }
  func.func @transform_0(%arg0: i32) -> (i32, i32) {
    %c0_i32 = arith.constant 0 : i32
    %c0_i32_0 = arith.constant 0 : i32
    %c0_i32_1 = arith.constant 0 : i32
    return %c0_i32, %c0_i32_0 : i32, i32
  }
  func.func @transform_1(%arg0: i32) -> (i32, i32) {
    %c0_i32 = arith.constant 0 : i32
    %c0_i32_0 = arith.constant 0 : i32
    %c0_i32_1 = arith.constant 0 : i32
    return %c0_i32, %c0_i32_0 : i32, i32
  }
  func.func @transform_2(%arg0: i32) -> (i32, i32) {
    %c0_i32 = arith.constant 0 : i32
    %c0_i32_0 = arith.constant 0 : i32
    %c0_i32_1 = arith.constant 0 : i32
    return %c0_i32, %c0_i32_0 : i32, i32
  }
  func.func @transform_3(%arg0: i32) -> (i32, i32) {
    %c0_i32 = arith.constant 0 : i32
    %c0_i32_0 = arith.constant 0 : i32
    %c0_i32_1 = arith.constant 0 : i32
    return %c0_i32, %c0_i32_0 : i32, i32
  }
}

</mosaic_0001>

<llo_original>
// kernel: tpu_custom_call.1
$region0: #{tpu_custom_call.1}
  #allocation0 [shape = 'u32[]', space=smem, size = 0x4, offset = 0x4, fixed_abs, tag = 'smem constant byte address 0x4 - core index']
  #allocation1 [shape = 'u32[144,128]{1,0:T(1,128)}', space=vmem, size = 0x12000, scoped, tag = 'internal scratch']
  %s0 = inlined_call_operand.hbm [shape: f32[16,128], index: 0, kind: input, shape index: {}]
  %s1 = inlined_call_operand.hbm [shape: f32[16,128], index: 1, kind: input, shape index: {}]
  %s2 = inlined_call_operand.hbm [shape: f32[16,128], index: 2, kind: input, shape index: {}]
  %s3 = inlined_call_operand.hbm [shape: f32[1,1], index: 3, kind: output, shape index: {}]
  %s4 = sld [smem:[#allocation0]]
  $region34: #{tpu_custom_call.1} parent=0
    _
  %s6 = ssub.s32 1, %s4
  %s7 = scalar_select 0, %s6, %s4
  $region1: #{tpu_custom_call.1} parent=0
    #allocation2 [shape = 'u8[8192]{0}', space=vmem, size = 0x2000, scoped, tag = 'input window, operand 0, single buffered']
    #allocation3 [shape = 's32[1]{0}', space=sflag, size = 0x4, scoped, tag = 'scoped memory for tpu_custom_call.1']
    #allocation4 [shape = 's32[1]{0}', space=sflag, size = 0x4, scoped, tag = 'scoped memory for tpu_custom_call.1']
    #allocation5 [shape = 'u8[8192]{0}', space=vmem, size = 0x2000, scoped, tag = 'input window, operand 1, single buffered']
    #allocation6 [shape = 's32[1]{0}', space=sflag, size = 0x4, scoped, tag = 'scoped memory for tpu_custom_call.1']
    #allocation7 [shape = 'u8[8192]{0}', space=vmem, size = 0x2000, scoped, tag = 'input window, operand 2, single buffered']
    #allocation8 [shape = 'u8[512]{0}', space=vmem, size = 0x400, scoped, tag = 'output window, operand 0, single buffered']
    %8 = vsyncpa [#allocation3], 0
    %9 = vsyncpa [#allocation6], 0
    %10 = vsyncpa [#allocation4], 0
    // Predicated region
    $region2: #{tpu_custom_call.1} parent=1 // pred_check
      _
    $region3: #{tpu_custom_call.1} parent=1 // pred_check_branch
      %12 = sbr.rel (0) target = $region5
    $region4: #{tpu_custom_call.1} parent=1 // pred_region
      %s14 = ssub.s32 256, 256
      %15 = vsyncadd [#allocation3], %s14
      %s16 = sshll.u32 [#allocation2], 4
      %s17 = int_to_ptr.vmem [resolvable:$true] %s16
      %22 = dma.hbm_to_vmem [thread:$0]  %s0, 256, %s17, [#allocation3], 128, 128, 8
    $region5: #{tpu_custom_call.1} parent=1 // pred_fallthru
      _
    // Predicated region
    $region6: #{tpu_custom_call.1} parent=1 // pred_check
      _
    $region7: #{tpu_custom_call.1} parent=1 // pred_check_branch
      %24 = sbr.rel (0) target = $region9
    $region8: #{tpu_custom_call.1} parent=1 // pred_region
      %s26 = ssub.s32 256, 256
      %27 = vsyncadd [#allocation6], %s26
      %s28 = sshll.u32 [#allocation5], 4
      %s29 = int_to_ptr.vmem [resolvable:$true] %s28
      %34 = dma.hbm_to_vmem [thread:$0]  %s1, 256, %s29, [#allocation6], 128, 128, 8
    $region9: #{tpu_custom_call.1} parent=1 // pred_fallthru
      _
    // Predicated region
    $region10: #{tpu_custom_call.1} parent=1 // pred_check
      _
    $region11: #{tpu_custom_call.1} parent=1 // pred_check_branch
      %36 = sbr.rel (0) target = $region13
    $region12: #{tpu_custom_call.1} parent=1 // pred_region
      %s38 = ssub.s32 256, 256
      %39 = vsyncadd [#allocation6], %s38
      %s40 = sshll.u32 [#allocation7], 4
      %s41 = int_to_ptr.vmem [resolvable:$true] %s40
      %46 = dma.hbm_to_vmem [thread:$0]  %s2, 256, %s41, [#allocation6], 128, 128, 8
    $region13: #{tpu_custom_call.1} parent=1 // pred_fallthru
      _
    // Predicated region
    $region14: #{tpu_custom_call.1} parent=1 // pred_check
      _
    $region15: #{tpu_custom_call.1} parent=1 // pred_check_branch
      %48 = sbr.rel (0) target = $region17
    $region16: #{tpu_custom_call.1} parent=1 // pred_region
      %49 = dma.done [#allocation3], 256
    $region17: #{tpu_custom_call.1} parent=1 // pred_fallthru
      _
    // Predicated region
    $region18: #{tpu_custom_call.1} parent=1 // pred_check
      _
    $region19: #{tpu_custom_call.1} parent=1 // pred_check_branch
      %51 = sbr.rel (0) target = $region21
    $region20: #{tpu_custom_call.1} parent=1 // pred_region
      %52 = dma.done [#allocation6], 256
    $region21: #{tpu_custom_call.1} parent=1 // pred_fallthru
      _
    // Predicated region
    $region22: #{tpu_custom_call.1} parent=1 // pred_check
      _
    $region23: #{tpu_custom_call.1} parent=1 // pred_check_branch
      %54 = sbr.rel (0) target = $region25
    $region24: #{tpu_custom_call.1} parent=1 // pred_region
      %55 = dma.done [#allocation6], 256
    $region25: #{tpu_custom_call.1} parent=1 // pred_fallthru
      _
    %v56 = vld [vmem:[#allocation2] sm:$0xff]
    %v57 = vld [vmem:[#allocation2 + $0x8] sm:$0xff]
    %v58 = vld [vmem:[#allocation5] sm:$0xff]
    %v59 = vld [vmem:[#allocation5 + $0x8] sm:$0xff]
    %v60 = vld [vmem:[#allocation7] sm:$0xff]
    %v61 = vld [vmem:[#allocation7 + $0x8] sm:$0xff]
    %v62 = vsub.f32 %v58, %v56
    %v63 = vsub.f32 %v59, %v57
    %v64 = vmax.f32 %v62, -0.4
    %v65 = vmax.f32 %v63, -0.4
    %v66 = vmin.f32 %v64, 0.4
    %v67 = vmin.f32 %v65, 0.4
    %v68 = vadd.f32 %v56, %v66
    %v69 = vadd.f32 %v57, %v67
    %v70 = vsub.f32 %v58, %v60
    %v71 = vsub.f32 %v59, %v61
    %v72 = vand.u32 2147483647, %v70
    %v73 = vand.u32 2147483647, %v71
    %vm74 = vcmp.lt.f32.partialorder %v72, 1.0
    %vm75 = vcmp.lt.f32.partialorder %v73, 1.0
    %v76 = vmul.f32 %v72, 0.5
    %v77 = vmul.f32 %v73, 0.5
    %v78 = vmul.f32 %v76, %v72
    %v79 = vmul.f32 %v77, %v73
    %v80 = vsub.f32 %v72, 0.5
    %v81 = vsub.f32 %v73, 0.5
    %v82 = vsel %vm74, %v78, %v80
    %v83 = vsel %vm75, %v79, %v81
    %v84 = vadd.f32 %v82, %v83
    %85 = vadd.xlane.f32.xlu0 %v84
    %v86 = vpop.xlane.xlu0 %85
    %v87 = vrot.slane %v86, 4
    %v88 = vadd.f32 %v86, %v87
    %v89 = vrot.slane %v88, 2
    %v90 = vadd.f32 %v88, %v89
    %v91 = vrot.slane %v90, 1
    %v92 = vadd.f32 %v90, %v91
    %s93 = vtos %v92
    %v94 = vstv %s93
    %v95 = vsub.f32 %v68, %v60
    %v96 = vsub.f32 %v69, %v61
    %v97 = vand.u32 2147483647, %v95
    %v98 = vand.u32 2147483647, %v96
    %vm99 = vcmp.lt.f32.partialorder %v97, 1.0
    %vm100 = vcmp.lt.f32.partialorder %v98, 1.0
    %v101 = vmul.f32 %v97, 0.5
    %v102 = vmul.f32 %v98, 0.5
    %v103 = vmul.f32 %v101, %v97
    %v104 = vmul.f32 %v102, %v98
    %v105 = vsub.f32 %v97, 0.5
    %v106 = vsub.f32 %v98, 0.5
    %v107 = vsel %vm99, %v103, %v105
    %v108 = vsel %vm100, %v104, %v106
    %v109 = vadd.f32 %v107, %v108
    %110 = vadd.xlane.f32.xlu0 %v109
    %v111 = vpop.xlane.xlu0 %110
    %v112 = vrot.slane %v111, 4
    %v113 = vadd.f32 %v111, %v112
    %v114 = vrot.slane %v113, 2
    %v115 = vadd.f32 %v113, %v114
    %v116 = vrot.slane %v115, 1
    %v117 = vadd.f32 %v115, %v116
    %s118 = vtos %v117
    %v119 = vstv %s118
    %v120 = vmax.f32 %v94, %v119
    %v121 = vmul.f32 %v120, 0.00048828125
    %vm122 = vcmask 0
    %123 = vst.msk [vmem:[#allocation8] sm:$0x1] %vm122, %v121
    // Predicated region
    $region26: #{tpu_custom_call.1} parent=1 // pred_check
      _
    $region27: #{tpu_custom_call.1} parent=1 // pred_check_branch
      %125 = sbr.rel (0) target = $region29
    $region28: #{tpu_custom_call.1} parent=1 // pred_region
      %s127 = ssub.s32 16, 16
      %128 = vsyncadd [#allocation4], %s127
      %s130 = sshll.u32 [#allocation8], 4
      %s131 = int_to_ptr.vmem [resolvable:$true] %s130
      %133 = dma.vmem_to_hbm [thread:$0]  %s131, 16, %s3, [#allocation4]
    $region29: #{tpu_custom_call.1} parent=1 // pred_fallthru
      _
    // Predicated region
    $region30: #{tpu_custom_call.1} parent=1 // pred_check
      _
    $region31: #{tpu_custom_call.1} parent=1 // pred_check_branch
      %135 = sbr.rel (0) target = $region33
    $region32: #{tpu_custom_call.1} parent=1 // pred_region
      %136 = dma.done [#allocation4], 16
    $region33: #{tpu_custom_call.1} parent=1 // pred_fallthru
      _
    %137 = vsyncpa [#allocation3], 1
    %138 = vsyncpa [#allocation6], 1
    %139 = vsyncpa [#allocation4], 1

</llo_original>
